<compile_context>
chip_gen: v7x
topology: tpu7x:2x2x1
jax: 0.10.0
libtpu: 0.0.40
codegen_flags: <defaults>
</compile_context>

<pallas_src>
import functools

import jax
import jax.numpy as jnp
from jax import lax
from jax.experimental import pallas as pl
from jax.experimental.pallas import tpu as pltpu


def _round_up(x, m):
    return ((x + m - 1) // m) * m


def _w2(a):
    return a.astype(jnp.float32)


def _b2(a):
    return a.reshape(1, -1).astype(jnp.float32)


# ----------------------------------------------------------------------------
# Row-tiled fused matmul / layernorm Pallas kernels (single- and multi-output)
# ----------------------------------------------------------------------------

def _row_call(kernel_fn, row_arrays, param_arrays, n_outs, *, block_rows=512):
    """Run kernel_fn over row tiles of 2-D row_arrays (parallel grid axis).

    param_arrays (weights / biases / LN params, all 2-D) are replicated to every tile.
    n_outs: int (single output) or tuple of ints (multiple outputs, all row-shaped).
    Rows are padded to a multiple of the tile size; the pad is sliced off afterwards.
    """
    single = isinstance(n_outs, int)
    if single:
        n_outs = (n_outs,)
    M = row_arrays[0].shape[0]
    tm = min(block_rows, _round_up(M, 8))
    Mp = _round_up(M, tm)
    if Mp != M:
        row_arrays = [jnp.pad(a, ((0, Mp - M), (0, 0))) for a in row_arrays]
    row_specs = [pl.BlockSpec((tm, a.shape[1]), lambda i: (i, 0)) for a in row_arrays]
    par_specs = [pl.BlockSpec(a.shape, lambda i: (0, 0)) for a in param_arrays]
    out_specs = tuple(pl.BlockSpec((tm, n), lambda i: (i, 0)) for n in n_outs)
    out_shapes = tuple(jax.ShapeDtypeStruct((Mp, n), jnp.float32) for n in n_outs)
    outs = pl.pallas_call(
        kernel_fn,
        out_shape=out_shapes if not single else out_shapes[0],
        grid=(Mp // tm,),
        in_specs=row_specs + par_specs,
        out_specs=out_specs if not single else out_specs[0],
        compiler_params=pltpu.CompilerParams(dimension_semantics=("parallel",)),
    )(*row_arrays, *param_arrays)
    if single:
        outs = (outs,)
    if Mp != M:
        outs = tuple(o[:M] for o in outs)
    return outs if not single else outs[0]


def _linear_kernel(x_ref, w_ref, b_ref, o_ref, *, pre_relu, post_relu):
    x = x_ref[...]
    if pre_relu:
        x = jnp.maximum(x, 0.0)
    y = jnp.dot(x, w_ref[...], preferred_element_type=jnp.float32) + b_ref[...]
    if post_relu:
        y = jnp.maximum(y, 0.0)
    o_ref[...] = y


def pallas_linear(x, w, b, *, pre_relu=False, post_relu=False):
    """x: [..., K] @ w: [K, Nout] + b: [Nout]  (optionally fused relu before/after)."""
    lead = x.shape[:-1]
    K = x.shape[-1]
    Nout = w.shape[-1]
    x2 = x.reshape(-1, K).astype(jnp.float32)
    out = _row_call(
        functools.partial(_linear_kernel, pre_relu=pre_relu, post_relu=post_relu),
        [x2], [_w2(w), _b2(b)], Nout)
    return out.reshape(*lead, Nout)


def _ln(y, g, b, eps):
    mu = jnp.mean(y, axis=-1, keepdims=True)
    yc = y - mu
    var = jnp.mean(yc * yc, axis=-1, keepdims=True)
    return yc * lax.rsqrt(var + eps) * g + b


def _lin_ln_kernel(x_ref, w_ref, b_ref, g_ref, bb_ref, o_ref, *, eps):
    y = jnp.dot(x_ref[...], w_ref[...], preferred_element_type=jnp.float32) + b_ref[...]
    o_ref[...] = _ln(y, g_ref[...], bb_ref[...], eps)


def pallas_linear_ln(x, lin, ln, eps=1e-5):
    """LayerNorm(x @ w + b) fused in one kernel."""
    lead = x.shape[:-1]
    K = x.shape[-1]
    Nout = lin['w'].shape[-1]
    x2 = x.reshape(-1, K).astype(jnp.float32)
    out = _row_call(functools.partial(_lin_ln_kernel, eps=eps),
                    [x2], [_w2(lin['w']), _b2(lin['b']), _b2(ln['g']), _b2(ln['b'])], Nout)
    return out.reshape(*lead, Nout)


def _lin_ln_proj_kernel(x_ref, w_ref, b_ref, g_ref, bb_ref, w2_ref, b2_ref,
                        o1_ref, o2_ref, *, eps):
    y = jnp.dot(x_ref[...], w_ref[...], preferred_element_type=jnp.float32) + b_ref[...]
    y = _ln(y, g_ref[...], bb_ref[...], eps)
    o1_ref[...] = y
    o2_ref[...] = jnp.dot(y, w2_ref[...], preferred_element_type=jnp.float32) + b2_ref[...]


def pallas_linear_ln_proj(x, lin, ln, lin2, eps=1e-5):
    """y = LayerNorm(x @ w + b); returns (y, y @ w2 + b2) from one kernel."""
    lead = x.shape[:-1]
    K = x.shape[-1]
    N1 = lin['w'].shape[-1]
    N2 = lin2['w'].shape[-1]
    x2 = x.reshape(-1, K).astype(jnp.float32)
    params = [_w2(lin['w']), _b2(lin['b']), _b2(ln['g']), _b2(ln['b']),
              _w2(lin2['w']), _b2(lin2['b'])]
    y, y2 = _row_call(functools.partial(_lin_ln_proj_kernel, eps=eps), [x2], params, (N1, N2))
    return y.reshape(*lead, N1), y2.reshape(*lead, N2)


def _lin_res_ln_kernel(x_ref, res_ref, w_ref, b_ref, g_ref, bb_ref, o_ref, *, eps):
    y = jnp.dot(x_ref[...], w_ref[...], preferred_element_type=jnp.float32) + b_ref[...]
    y = y + res_ref[...]
    o_ref[...] = _ln(y, g_ref[...], bb_ref[...], eps)


def pallas_linear_res_ln(x, lin, res, ln, eps=1e-5):
    """LayerNorm(res + x @ w + b) fused in one kernel."""
    lead = x.shape[:-1]
    K = x.shape[-1]
    Nout = lin['w'].shape[-1]
    x2 = x.reshape(-1, K).astype(jnp.float32)
    r2 = res.reshape(-1, Nout).astype(jnp.float32)
    out = _row_call(functools.partial(_lin_res_ln_kernel, eps=eps),
                    [x2, r2], [_w2(lin['w']), _b2(lin['b']), _b2(ln['g']), _b2(ln['b'])], Nout)
    return out.reshape(*lead, Nout)


def _transition_affine_kernel(x_ref, w0_ref, b0_ref, w1_ref, b1_ref, g_ref, bb_ref,
                              wa_ref, ba_ref, o_ref, u_ref, *, eps):
    x = x_ref[...]
    t = jnp.dot(x, w0_ref[...], preferred_element_type=jnp.float32) + b0_ref[...]
    t = jnp.maximum(t, 0.0)
    t = jnp.dot(t, w1_ref[...], preferred_element_type=jnp.float32) + b1_ref[...]
    y = _ln(x + t, g_ref[...], bb_ref[...], eps)
    o_ref[...] = y
    u_ref[...] = jnp.dot(y, wa_ref[...], preferred_element_type=jnp.float32) + ba_ref[...]


def pallas_transition_affine(x, lin0, lin1, ln, aff, eps=1e-5):
    """y = LayerNorm(x + Lin1(relu(Lin0(x)))); returns (y, y @ w_aff + b_aff) fused."""
    lead = x.shape[:-1]
    C = x.shape[-1]
    Na = aff['w'].shape[-1]
    x2 = x.reshape(-1, C).astype(jnp.float32)
    params = [_w2(lin0['w']), _b2(lin0['b']), _w2(lin1['w']), _b2(lin1['b']),
              _b2(ln['g']), _b2(ln['b']), _w2(aff['w']), _b2(aff['b'])]
    y, upd = _row_call(functools.partial(_transition_affine_kernel, eps=eps),
                       [x2], params, (C, Na))
    return y.reshape(*lead, C), upd.reshape(*lead, Na)


def _sc_in_kernel(x0_ref, x1_ref, w0_ref, b0_ref, w1_ref, b1_ref, o_ref):
    a = jnp.dot(jnp.maximum(x0_ref[...], 0.0), w0_ref[...],
                preferred_element_type=jnp.float32) + b0_ref[...]
    a = a + jnp.dot(jnp.maximum(x1_ref[...], 0.0), w1_ref[...],
                    preferred_element_type=jnp.float32) + b1_ref[...]
    o_ref[...] = a


def pallas_sidechain_in(x0, x1, lin0, lin1):
    """Lin0(relu(x0)) + Lin1(relu(x1)) fused in one kernel."""
    lead = x0.shape[:-1]
    Nout = lin0['w'].shape[-1]
    a0 = x0.reshape(-1, x0.shape[-1]).astype(jnp.float32)
    a1 = x1.reshape(-1, x1.shape[-1]).astype(jnp.float32)
    out = _row_call(_sc_in_kernel, [a0, a1],
                    [_w2(lin0['w']), _b2(lin0['b']), _w2(lin1['w']), _b2(lin1['b'])], Nout)
    return out.reshape(*lead, Nout)


def _sc_resblock_kernel(x_ref, w1_ref, b1_ref, w2_ref, b2_ref, o_ref):
    x = x_ref[...]
    a = jnp.dot(jnp.maximum(x, 0.0), w1_ref[...],
                preferred_element_type=jnp.float32) + b1_ref[...]
    a = jnp.dot(jnp.maximum(a, 0.0), w2_ref[...],
                preferred_element_type=jnp.float32) + b2_ref[...]
    o_ref[...] = x + a


def pallas_sidechain_resblock(x, l1, l2):
    """x + Lin2(relu(Lin1(relu(x)))) fused in one kernel."""
    lead = x.shape[:-1]
    C = x.shape[-1]
    x2 = x.reshape(-1, C).astype(jnp.float32)
    out = _row_call(_sc_resblock_kernel, [x2],
                    [_w2(l1['w']), _b2(l1['b']), _w2(l2['w']), _b2(l2['b'])], C)
    return out.reshape(*lead, C)


# ----------------------------------------------------------------------------
# IPA attention core: head-batched, key-tiled online softmax
# ----------------------------------------------------------------------------

def _ipa_attn_kernel(qc_ref, kc_ref, vs_ref, vp_ref, b2d_ref, q2_ref, kt_ref, pair_ref,
                     os_ref, op_ref, opr_ref,
                     m_sc, l_sc, acc_s, acc_p, acc_pr, *, H):
    j = pl.program_id(1)
    nj = pl.num_programs(1)

    @pl.when(j == 0)
    def _init():
        m_sc[...] = jnp.full(m_sc.shape, -1e30, jnp.float32)
        l_sc[...] = jnp.zeros(l_sc.shape, jnp.float32)
        acc_s[...] = jnp.zeros(acc_s.shape, jnp.float32)
        acc_p[...] = jnp.zeros(acc_p.shape, jnp.float32)
        acc_pr[...] = jnp.zeros(acc_pr.shape, jnp.float32)

    qc = qc_ref[0]            # [H, N, Dqk]   (scalar_w*q_scalar | sqrt(2)*scaled q_point)
    kc = kc_ref[0]            # [H, Tj, Dqk]  (k_scalar        | sqrt(2)*scaled k_point)

    # combined scalar + point cross-term logits, batched over heads (MXU).
    s = jnp.einsum('hid,hjd->hij', qc, kc, preferred_element_type=jnp.float32)  # [H,N,Tj]
    s = s - q2_ref[0]          # [H,N,1]  : -|q_point|^2
    s = s - kt_ref[0]          # [H,1,Tj] : -|k_point|^2 + mask bias (prefolded)
    s = s + b2d_ref[0]         # [H,N,Tj] : pair bias (pair_w prefolded into weights)

    m_prev = m_sc[...]
    m_new = jnp.maximum(m_prev, jnp.max(s, axis=-1, keepdims=True))
    alpha = jnp.exp(m_prev - m_new)
    p = jnp.exp(s - m_new)                                           # [H, N, Tj]

    l_sc[...] = alpha * l_sc[...] + jnp.sum(p, axis=-1, keepdims=True)
    acc_s[...] = alpha * acc_s[...] + jnp.einsum(
        'hij,hjd->hid', p, vs_ref[0], preferred_element_type=jnp.float32)
    acc_p[...] = alpha * acc_p[...] + jnp.einsum(
        'hij,hjd->hid', p, vp_ref[0], preferred_element_type=jnp.float32)

    # pair aggregation: sum_j p[h,i,j] * pair[i,j,c].  Batched-over-query contraction needs
    # an in-kernel sublane transpose to hit the MXU; keep the proven VPU broadcast-reduce
    # per head (pair block is read from HBM only once per (batch, key-tile)).
    pair_blk = pair_ref[0]                                           # [N, Tj, Cp]
    for h in range(H):
        upd = jnp.sum(p[h][:, :, None] * pair_blk, axis=1)           # [N, Cp]
        acc_pr[h] = alpha[h] * acc_pr[h] + upd

    m_sc[...] = m_new

    @pl.when(j == nj - 1)
    def _finalize():
        inv = pl.reciprocal(l_sc[...], approx=True)                  # [H, N, 1]
        os_ref[0] = acc_s[...] * inv
        op_ref[0] = acc_p[...] * inv
        opr_ref[0] = acc_pr[...] * inv


def ipa_attention_core(qc, kc, v_s, v_p, b2d, q2, kterm, pair):
    B, H, N, Dqk = qc.shape
    Sv = v_s.shape[-1]
    Dv = v_p.shape[-1]
    Cp = pair.shape[-1]

    Tj = 128 if (N >= 128 and N % 128 == 0) else N
    NJ = N // Tj

    in_specs = [
        pl.BlockSpec((1, H, N, Dqk), lambda b, j: (b, 0, 0, 0)),    # qc (resident over j)
        pl.BlockSpec((1, H, Tj, Dqk), lambda b, j: (b, 0, j, 0)),   # kc
        pl.BlockSpec((1, H, Tj, Sv), lambda b, j: (b, 0, j, 0)),    # v_s
        pl.BlockSpec((1, H, Tj, Dv), lambda b, j: (b, 0, j, 0)),    # v_p
        pl.BlockSpec((1, H, N, Tj), lambda b, j: (b, 0, 0, j)),     # pair bias
        pl.BlockSpec((1, H, N, 1), lambda b, j: (b, 0, 0, 0)),      # q2
        pl.BlockSpec((1, H, 1, Tj), lambda b, j: (b, 0, 0, j)),     # k2 - mask bias
        pl.BlockSpec((1, N, Tj, Cp), lambda b, j: (b, 0, j, 0)),    # pair activations
    ]
    out_specs = (
        pl.BlockSpec((1, H, N, Sv), lambda b, j: (b, 0, 0, 0)),
        pl.BlockSpec((1, H, N, Dv), lambda b, j: (b, 0, 0, 0)),
        pl.BlockSpec((1, H, N, Cp), lambda b, j: (b, 0, 0, 0)),
    )
    out_shapes = (
        jax.ShapeDtypeStruct((B, H, N, Sv), jnp.float32),
        jax.ShapeDtypeStruct((B, H, N, Dv), jnp.float32),
        jax.ShapeDtypeStruct((B, H, N, Cp), jnp.float32),
    )
    scratch_shapes = [
        pltpu.VMEM((H, N, 1), jnp.float32),     # running max
        pltpu.VMEM((H, N, 1), jnp.float32),     # running sum
        pltpu.VMEM((H, N, Sv), jnp.float32),    # scalar value acc
        pltpu.VMEM((H, N, Dv), jnp.float32),    # point value acc
        pltpu.VMEM((H, N, Cp), jnp.float32),    # pair acc
    ]
    return pl.pallas_call(
        functools.partial(_ipa_attn_kernel, H=H),
        out_shape=out_shapes,
        grid=(B, NJ),
        in_specs=in_specs,
        out_specs=out_specs,
        scratch_shapes=scratch_shapes,
        compiler_params=pltpu.CompilerParams(
            dimension_semantics=("parallel", "arbitrary")),
    )(qc, kc, v_s, v_p, b2d, q2, kterm, pair)


# ----------------------------------------------------------------------------
# Quaternion / rigid helpers (tiny elementwise glue, plain JAX)
# ----------------------------------------------------------------------------

def make_identity_quat(shape):
    q = jnp.zeros(shape + (4,), jnp.float32)
    return q.at[..., 0].set(1.0)


def quat_to_rot(q):
    a, b, c, d = q[..., 0], q[..., 1], q[..., 2], q[..., 3]
    r0 = jnp.stack([a * a + b * b - c * c - d * d, 2 * (b * c - a * d), 2 * (b * d + a * c)], -1)
    r1 = jnp.stack([2 * (b * c + a * d), a * a - b * b + c * c - d * d, 2 * (c * d - a * b)], -1)
    r2 = jnp.stack([2 * (b * d - a * c), 2 * (c * d + a * b), a * a - b * b - c * c + d * d], -1)
    return jnp.stack([r0, r1, r2], axis=-2)


def quat_multiply(q1, q2):
    w1, x1, y1, z1 = q1[..., 0], q1[..., 1], q1[..., 2], q1[..., 3]
    w2, x2, y2, z2 = q2[..., 0], q2[..., 1], q2[..., 2], q2[..., 3]
    return jnp.stack([
        w1 * w2 - x1 * x2 - y1 * y2 - z1 * z2,
        w1 * x2 + x1 * w2 + y1 * z2 - z1 * y2,
        w1 * y2 - x1 * z2 + y1 * w2 + z1 * x2,
        w1 * z2 + x1 * y2 - y1 * x2 + z1 * w2,
    ], axis=-1)


def quat_multiply_by_vec(q, v):
    w, x, y, z = q[..., 0], q[..., 1], q[..., 2], q[..., 3]
    vx, vy, vz = v[..., 0], v[..., 1], v[..., 2]
    return jnp.stack([
        -x * vx - y * vy - z * vz,
        w * vx + y * vz - z * vy,
        w * vy - x * vz + z * vx,
        w * vz + x * vy - y * vx,
    ], axis=-1)


def quat_precompose_vec(quat, vec_update):
    new_q = quat + quat_multiply_by_vec(quat, vec_update)
    return new_q / jnp.linalg.norm(new_q, axis=-1, keepdims=True)


def rigids_mul_vecs(rots, trans, v):
    return jnp.einsum('bnij,bnj->bni', rots, v) + trans


def apply_mask(a_diff, a_0, diff_mask):
    return diff_mask * a_diff + (1.0 - diff_mask) * a_0


# ----------------------------------------------------------------------------
# Sub-modules
# ----------------------------------------------------------------------------

def ipa_features(p, act, pair, mask, rots, trans, cfg):
    """Invariant Point Attention features (everything up to the output projection)."""
    B, N, _ = act.shape
    H, Sqk, Sv = cfg['num_head'], cfg['num_scalar_qk'], cfg['num_scalar_v']
    Pqk, Pv = cfg['num_point_qk'], cfg['num_point_v']
    Cp = pair.shape[-1]

    scalar_w = (1.0 / (3.0 * max(Sqk, 1))) ** 0.5

    # ---- fused, lane-dense q/k/v projection (one matmul instead of six) ----
    # scalar-qk scale folded directly into the q_scalar projection weights (free).
    wqkv = jnp.concatenate([p['q_scalar']['w'] * scalar_w, p['k_scalar']['w'],
                            p['v_scalar']['w'],
                            p['q_point']['w'], p['k_point']['w'], p['v_point']['w']], axis=1)
    bqkv = jnp.concatenate([p['q_scalar']['b'] * scalar_w, p['k_scalar']['b'],
                            p['v_scalar']['b'],
                            p['q_point']['b'], p['k_point']['b'], p['v_point']['b']], axis=0)
    qkv = pallas_linear(act, wqkv, bqkv)

    off = [0]

    def take(n):
        r = qkv[..., off[0]:off[0] + n]
        off[0] += n
        return r

    q_s = take(H * Sqk)
    k_s = take(H * Sqk)
    v_s = take(H * Sv)
    q_pl = take(H * Pqk * 3)
    k_pl = take(H * Pqk * 3)
    v_pl = take(H * Pv * 3)

    def to_global(loc, npts):
        loc = loc.reshape(B, N, H * npts, 3)
        return jnp.einsum('bnij,bnpj->bnpi', rots, loc) + trans[:, :, None, :]

    point_w_scale = (1.0 / (3.0 * max(Pqk, 1) * 9.0 / 2.0)) ** 0.5
    head_w = jax.nn.softplus(p['point_weights'])                   # [H]
    s_head = jnp.sqrt(0.5 * head_w * point_w_scale)                # pre-scale points so that
                                                                   # ||sq - sk||^2 = 0.5*w*d^2
    q_pg = to_global(q_pl, Pqk)
    k_pg = to_global(k_pl, Pqk)
    v_pg = to_global(v_pl, Pv)

    def head_major_points(x, npts, scale=None):
        x = x.reshape(B, N, H, npts, 3)
        if scale is not None:
            x = x * scale[None, None, :, None, None]
        return jnp.transpose(x, (0, 2, 1, 3, 4)).reshape(B, H, N, npts * 3)

    def head_major(x, d):
        return jnp.transpose(x.reshape(B, N, H, d), (0, 2, 1, 3))

    q_pm = head_major_points(q_pg, Pqk, s_head)                    # [B,H,N,3*Pqk]
    k_pm = head_major_points(k_pg, Pqk, s_head)
    v_pm = head_major_points(v_pg, Pv)                             # [B,H,N,3*Pv]
    q_sm = head_major(q_s, Sqk)                                    # already scalar_w-scaled
    k_sm = head_major(k_s, Sqk)
    v_sm = head_major(v_s, Sv)

    sqrt2 = float(2.0 ** 0.5)
    # fused scalar+point query/key features: qc.kc = scalar_w*qs.ks + 2*qp.kp
    qc = jnp.concatenate([q_sm, sqrt2 * q_pm], axis=-1)             # [B,H,N,Sqk+3Pqk]
    kc = jnp.concatenate([k_sm, sqrt2 * k_pm], axis=-1)

    q2 = jnp.sum(q_pm * q_pm, axis=-1, keepdims=True)               # [B,H,N,1]
    k2 = jnp.sum(k_pm * k_pm, axis=-1)                              # [B,H,N]
    mask_bias = (mask.astype(jnp.float32) - 1.0) * 1e9              # [B,N]
    kterm = (k2 - mask_bias[:, None, :])[:, :, None, :]             # [B,H,1,N]

    # pair bias (pair_w folded into the projection weights -> zero in-kernel cost)
    pair_w = (1.0 / 3.0) ** 0.5
    b2d = pallas_linear(pair, p['att_2d']['w'] * pair_w, p['att_2d']['b'] * pair_w)
    b2d = jnp.transpose(b2d, (0, 3, 1, 2))                          # [B,H,N,N]

    out_s, out_p, out_pr = ipa_attention_core(
        qc, kc, v_sm, v_pm, b2d, q2, kterm, pair.astype(jnp.float32))

    out_s = jnp.transpose(out_s, (0, 2, 1, 3)).reshape(B, N, H * Sv)
    gp = jnp.transpose(out_p, (0, 2, 1, 3)).reshape(B, N, H * Pv, 3)
    out_pr = jnp.transpose(out_pr, (0, 2, 1, 3)).reshape(B, N, H * Cp)

    # transform aggregated points back to the local frame, compute norms
    lp = jnp.einsum('bnij,bnpi->bnpj', rots, gp - trans[:, :, None, :])
    norms = jnp.sqrt(jnp.sum(lp * lp, axis=-1) + 1e-8)              # [B,N,H*Pv]

    feat = jnp.concatenate(
        [out_s, lp.reshape(B, N, H * Pv * 3), norms, out_pr], axis=-1)
    return feat


def sidechain_module(p, seq, rigids, acts, compute_atom_pos):
    """MultiRigidSidechain: angle resnet.  Atom reconstruction omitted (see TODO)."""
    act = pallas_sidechain_in(acts[0], acts[1], p['in0'], p['in1'])
    for blk in p['resblocks']:
        act = pallas_sidechain_resblock(act, blk['l1'], blk['l2'])
    unnorm = pallas_linear(act, p['angles']['w'], p['angles']['b'], pre_relu=True)
    B, N, _ = unnorm.shape
    unnorm = unnorm.reshape(B, N, 7, 2)
    angles = unnorm / jnp.sqrt(jnp.sum(unnorm * unnorm, axis=-1, keepdims=True) + 1e-8)
    out = {'angles_sin_cos': angles, 'unnormalized_angles_sin_cos': unnorm}
    if compute_atom_pos:
        # TODO(synk): atom37/atom14 coordinate reconstruction requires residue-constant
        # rigid-group tables (torsion frames, literature positions); not available here.
        pass
    return out


class SimpleDiffuser:
    """Simplified stand-in for the SE(3) diffuser's score computations."""

    def __init__(self, b_min=0.1, b_max=20.0):
        self.b_min, self.b_max = b_min, b_max

    def _marginal_b_t(self, t):
        return t * self.b_min + 0.5 * t * t * (self.b_max - self.b_min)

    def calc_trans_score(self, trans_t, trans_0, t):
        beta = self._marginal_b_t(t)[:, None, None]
        cond_var = 1.0 - jnp.exp(-beta)
        return -(trans_t - jnp.exp(-0.5 * beta) * trans_0) / cond_var

    def calc_quat_score(self, quat_t, quat_0, t):
        # TODO(synk): exact IGSO(3) score needs precomputed CDF/score tables; this uses a
        # small-angle Gaussian approximation on the relative rotation vector.
        conj = quat_t * jnp.array([1.0, -1.0, -1.0, -1.0], jnp.float32)
        rel = quat_multiply(conj, quat_0)
        v = rel[..., 1:]
        w = rel[..., :1]
        vn = jnp.linalg.norm(v, axis=-1, keepdims=True)
        angle = 2.0 * jnp.arctan2(vn, w)
        axis = v / jnp.maximum(vn, 1e-8)
        rotvec = angle * axis
        var = jnp.maximum(t, 1e-3)[:, None, None]
        return -rotvec / var


# ----------------------------------------------------------------------------
# IpaScore forward
# ----------------------------------------------------------------------------

def ipa_score_forward(params, representations, batch, cfg, diffuser):
    c = cfg
    B = batch['seq_t'].shape[0]
    N = batch['anchor_flag'].shape[1]

    seq_in = representations['seq'].astype(jnp.float32)
    pair_in = representations['pair'].astype(jnp.float32)
    node_mask = batch['mask'].astype(jnp.float32)
    fixed_mask = batch['fixed_mask'].astype(jnp.float32)

    init_rigids = batch['rigids_t'].astype(jnp.float32)
    init_trans = init_rigids[..., 4:]
    init_quats = init_rigids[..., :4]
    delta_quat = make_identity_quat((B, N))

    curr_quats = init_quats
    curr_trans = init_trans / c['position_scale']
    curr_rots = quat_to_rot(curr_quats)

    # fused: seq projection + LayerNorm + proj_seq  (one kernel, two outputs)
    initial_seq_act, seq_act = pallas_linear_ln_proj(
        seq_in, params['proj_init_seq_act'], params['init_seq_layer_norm'],
        params['proj_seq'])
    # fused: pair projection + LayerNorm
    static_pair_act = pallas_linear_ln(pair_in, params['proj_init_pair_act'],
                                       params['init_pair_layer_norm'])

    outputs = {'traj': [], 'sidechains': []}
    for fold_it in range(c['num_layer']):
        is_last = fold_it == c['num_layer'] - 1

        feat = ipa_features(params['attention_module'], seq_act, static_pair_act,
                            node_mask, curr_rots, curr_trans, c)
        # fused: IPA output projection + residual + (dropout==identity) + LayerNorm
        seq_act = pallas_linear_res_ln(feat, params['attention_module']['output'],
                                       seq_act, params['attention_layer_norm'])
        # fused: transition (linear -> relu -> linear) + residual + LayerNorm + affine update
        seq_act, upd = pallas_transition_affine(
            seq_act, params['transition'][0], params['transition'][1],
            params['transition_layer_norm'], params['affine_update'])   # upd: [B,N,6]
        quaternion_update, translation_update = upd[..., :3], upd[..., 3:]

        delta_quat = quat_precompose_vec(delta_quat, quaternion_update)
        curr_quats = quat_precompose_vec(curr_quats, quaternion_update)
        curr_trans = rigids_mul_vecs(curr_rots, curr_trans, translation_update)

        diff_mask = 1.0 - fixed_mask[..., None]
        curr_quats = apply_mask(curr_quats, init_quats, diff_mask)
        curr_trans = apply_mask(curr_trans, init_trans / c['position_scale'], diff_mask)
        curr_rots = quat_to_rot(curr_quats)

        outputs['traj'].append((curr_rots, curr_trans * c['position_scale']))
        if is_last:  # eval mode: self.training is False
            sc = sidechain_module(params['sidechain'], batch['seq_t'],
                                  (curr_rots, curr_trans * c['position_scale']),
                                  [seq_act, initial_seq_act], compute_atom_pos=is_last)
            outputs['sidechains'].append(sc)
        # .detach() -> no-op (inference, no autograd)

    curr_quats_ = quat_multiply(init_quats, delta_quat)
    curr_quats_ = apply_mask(curr_quats_, init_quats, 1.0 - fixed_mask[..., None])

    rot_score = diffuser.calc_quat_score(init_quats, curr_quats_, batch['t'])
    trans_score = diffuser.calc_trans_score(init_trans, curr_trans * c['position_scale'],
                                            batch['t'])

    outputs['trans_score'] = trans_score
    outputs['rot_score'] = rot_score
    outputs['representations'] = {'structure_module': seq_act}
    outputs['rigids'] = jnp.concatenate(
        [curr_quats_, curr_trans * c['position_scale']], axis=-1)
    return outputs


# ----------------------------------------------------------------------------
# Deterministic parameter init
# ----------------------------------------------------------------------------

def _lin(key, fi, fo):
    kw, kb = jax.random.split(key)
    return {'w': jax.random.normal(kw, (fi, fo), jnp.float32) / jnp.sqrt(float(fi)),
            'b': 0.01 * jax.random.normal(kb, (fo,), jnp.float32)}


def _ln_p(dim):
    return {'g': jnp.ones((dim,), jnp.float32), 'b': jnp.zeros((dim,), jnp.float32)}


def init_params(key, cfg):
    C = cfg['num_channel']
    Cp = cfg['pair_channel']
    Cs = cfg['sidechain_num_channel']
    H, Sqk, Sv = cfg['num_head'], cfg['num_scalar_qk'], cfg['num_scalar_v']
    Pqk, Pv = cfg['num_point_qk'], cfg['num_point_v']
    ks = iter(jax.random.split(key, 40))
    params = {
        'proj_init_seq_act': _lin(next(ks), cfg['num_in_seq_channel_total'], C),
        'proj_init_pair_act': _lin(next(ks), cfg['num_in_pair_channel_total'], Cp),
        'init_seq_layer_norm': _ln_p(C),
        'init_pair_layer_norm': _ln_p(Cp),
        'proj_seq': _lin(next(ks), C, C),
        'attention_module': {
            'q_scalar': _lin(next(ks), C, H * Sqk),
            'k_scalar': _lin(next(ks), C, H * Sqk),
            'v_scalar': _lin(next(ks), C, H * Sv),
            'q_point': _lin(next(ks), C, H * Pqk * 3),
            'k_point': _lin(next(ks), C, H * Pqk * 3),
            'v_point': _lin(next(ks), C, H * Pv * 3),
            'att_2d': _lin(next(ks), Cp, H),
            'point_weights': jnp.full((H,), 0.541324854612918, jnp.float32),  # softplus^-1(1)
            'output': _lin(next(ks), H * Sv + H * Pv * 3 + H * Pv + H * Cp, C),
        },
        'attention_layer_norm': _ln_p(C),
        'transition': [_lin(next(ks), C, C) for _ in range(cfg['num_layer_in_transition'])],
        'transition_layer_norm': _ln_p(C),
        'affine_update': _lin(next(ks), C, 6),
        'sidechain': {
            'in0': _lin(next(ks), C, Cs),
            'in1': _lin(next(ks), C, Cs),
            'resblocks': [{'l1': _lin(next(ks), Cs, Cs), 'l2': _lin(next(ks), Cs, Cs)}
                          for _ in range(2)],
            'angles': _lin(next(ks), Cs, 14),
        },
    }
    return params


# ----------------------------------------------------------------------------
# Main
# ----------------------------------------------------------------------------

if __name__ == "__main__":
    cfg = {
        'index_embed_size': 8,
        'num_in_seq_channel': 16,
        'num_in_pair_channel': 16,
        'num_channel': 32,
        'pair_channel': 16,               # = num_in_pair_channel arg
        'num_head': 4, 'num_scalar_qk': 4, 'num_scalar_v': 8,
        'num_point_qk': 4, 'num_point_v': 4,
        'num_layer': 2, 'num_layer_in_transition': 2,
        'position_scale': 10.0, 'dropout': 0.1,
        'sidechain_num_channel': 32,
    }
    cfg['num_in_seq_channel_total'] = cfg['index_embed_size'] + cfg['num_in_seq_channel']
    cfg['num_in_pair_channel_total'] = 2 * cfg['index_embed_size'] + cfg['num_in_pair_channel']

    B, N = 2, 8
    key = jax.random.PRNGKey(0)
    kp, kd = jax.random.split(key)
    params = init_params(kp, cfg)

    ks = jax.random.split(kd, 8)
    representations = {
        'seq': jax.random.normal(ks[0], (B, N, cfg['num_in_seq_channel_total']), jnp.float32),
        'pair': jax.random.normal(ks[1], (B, N, N, cfg['num_in_pair_channel_total']), jnp.float32),
    }
    quats = jax.random.normal(ks[2], (B, N, 4), jnp.float32)
    quats = quats / jnp.linalg.norm(quats, axis=-1, keepdims=True)
    trans = 5.0 * jax.random.normal(ks[3], (B, N, 3), jnp.float32)
    batch = {
        'seq_t': jax.random.randint(ks[4], (B, N), 0, 20),
        'anchor_flag': jnp.zeros((B, N), jnp.float32),
        'mask': jnp.ones((B, N), jnp.float32),
        'fixed_mask': (jax.random.uniform(ks[5], (B, N)) < 0.3).astype(jnp.float32),
        'rigids_t': jnp.concatenate([quats, trans], axis=-1),
        't': jax.random.uniform(ks[6], (B,), minval=0.1, maxval=1.0),
    }

    diffuser = SimpleDiffuser()
    outputs = ipa_score_forward(params, representations, batch, cfg, diffuser)
    jax.block_until_ready(outputs)

    assert outputs['rigids'].shape == (B, N, 7)
    assert outputs['trans_score'].shape == (B, N, 3)
    assert outputs['rot_score'].shape == (B, N, 3)
    assert outputs['representations']['structure_module'].shape == (B, N, cfg['num_channel'])
    assert len(outputs['traj']) == cfg['num_layer']
    assert outputs['sidechains'][0]['angles_sin_cos'].shape == (B, N, 7, 2)
    print("KERNEL_OK")
</pallas_src>

<mosaic_0001>
module attributes {stable_mosaic.version = 11 : i64} {
  func.func @_lin_ln_proj_kernel(%arg0: i32, %arg1: memref<16x24xf32, #tpu.memory_space<vmem>>, %arg2: memref<24x32xf32, #tpu.memory_space<vmem>>, %arg3: memref<1x32xf32, #tpu.memory_space<vmem>>, %arg4: memref<1x32xf32, #tpu.memory_space<vmem>>, %arg5: memref<1x32xf32, #tpu.memory_space<vmem>>, %arg6: memref<32x32xf32, #tpu.memory_space<vmem>>, %arg7: memref<1x32xf32, #tpu.memory_space<vmem>>, %arg8: memref<16x32xf32, #tpu.memory_space<vmem>>, %arg9: memref<16x32xf32, #tpu.memory_space<vmem>>) attributes {dimension_semantics = [#tpu.dimension_semantics<parallel>], iteration_bounds = array<i64: 1>, scalar_prefetch = 0 : i64, scratch_operands = 0 : i64, tpu.core_type = #tpu.core_type<tc>, window_params = [{transform_indices = @transform_0, window_bounds = array<i64: 16, 24>}, {pipeline_mode = #tpu.pipeline_mode<synchronous>, transform_indices = @transform_1, window_bounds = array<i64: 24, 32>}, {pipeline_mode = #tpu.pipeline_mode<synchronous>, transform_indices = @transform_2, window_bounds = array<i64: 1, 32>}, {pipeline_mode = #tpu.pipeline_mode<synchronous>, transform_indices = @transform_3, window_bounds = array<i64: 1, 32>}, {pipeline_mode = #tpu.pipeline_mode<synchronous>, transform_indices = @transform_4, window_bounds = array<i64: 1, 32>}, {pipeline_mode = #tpu.pipeline_mode<synchronous>, transform_indices = @transform_5, window_bounds = array<i64: 32, 32>}, {pipeline_mode = #tpu.pipeline_mode<synchronous>, transform_indices = @transform_6, window_bounds = array<i64: 1, 32>}, {transform_indices = @transform_7, window_bounds = array<i64: 16, 32>}, {transform_indices = @transform_8, window_bounds = array<i64: 16, 32>}]} {
    %c0 = arith.constant 0 : index
    %c0_0 = arith.constant 0 : index
    %0 = vector.load %arg1[%c0, %c0_0] : memref<16x24xf32, #tpu.memory_space<vmem>>, vector<16x24xf32>
    %c0_1 = arith.constant 0 : index
    %c0_2 = arith.constant 0 : index
    %1 = vector.load %arg2[%c0_1, %c0_2] : memref<24x32xf32, #tpu.memory_space<vmem>>, vector<24x32xf32>
    %cst = arith.constant dense<0.000000e+00> : vector<16x32xf32>
    %2 = tpu.matmul %0, %1, %cst {dimension_numbers = #tpu.dot_dimension_numbers<[1], [0], [0], [1], [0, 0, 1, 1], [], []>} : vector<16x24xf32>, vector<24x32xf32>, vector<16x32xf32> -> vector<16x32xf32>
    %c0_3 = arith.constant 0 : index
    %c0_4 = arith.constant 0 : index
    %3 = vector.load %arg3[%c0_3, %c0_4] : memref<1x32xf32, #tpu.memory_space<vmem>>, vector<1x32xf32>
    %4 = vector.broadcast %3 : vector<1x32xf32> to vector<16x32xf32>
    %5 = arith.addf %2, %4 : vector<16x32xf32>
    %c0_5 = arith.constant 0 : index
    %c0_6 = arith.constant 0 : index
    %6 = vector.load %arg4[%c0_5, %c0_6] : memref<1x32xf32, #tpu.memory_space<vmem>>, vector<1x32xf32>
    %c0_7 = arith.constant 0 : index
    %c0_8 = arith.constant 0 : index
    %7 = vector.load %arg5[%c0_7, %c0_8] : memref<1x32xf32, #tpu.memory_space<vmem>>, vector<1x32xf32>
    %cst_9 = arith.constant dense<0.000000e+00> : vector<16xf32>
    %8 = vector.multi_reduction <add>, %5, %cst_9 [1] : vector<16x32xf32> to vector<16xf32>
    %9 = vector.shape_cast %8 : vector<16xf32> to vector<16x1xf32>
    %cst_10 = arith.constant 3.200000e+01 : f32
    %10 = vector.broadcast %cst_10 : f32 to vector<16x1xf32>
    %11 = arith.divf %9, %10 : vector<16x1xf32>
    %12 = vector.broadcast %11 : vector<16x1xf32> to vector<16x32xf32>
    %13 = arith.subf %5, %12 : vector<16x32xf32>
    %14 = arith.mulf %13, %13 : vector<16x32xf32>
    %cst_11 = arith.constant dense<0.000000e+00> : vector<16xf32>
    %15 = vector.multi_reduction <add>, %14, %cst_11 [1] : vector<16x32xf32> to vector<16xf32>
    %16 = vector.shape_cast %15 : vector<16xf32> to vector<16x1xf32>
    %cst_12 = arith.constant 3.200000e+01 : f32
    %17 = vector.broadcast %cst_12 : f32 to vector<16x1xf32>
    %18 = arith.divf %16, %17 : vector<16x1xf32>
    %cst_13 = arith.constant 9.99999974E-6 : f32
    %19 = vector.broadcast %cst_13 : f32 to vector<16x1xf32>
    %20 = arith.addf %18, %19 : vector<16x1xf32>
    %21 = math.rsqrt %20 : vector<16x1xf32>
    %22 = vector.broadcast %21 : vector<16x1xf32> to vector<16x32xf32>
    %23 = arith.mulf %13, %22 : vector<16x32xf32>
    %24 = vector.broadcast %6 : vector<1x32xf32> to vector<16x32xf32>
    %25 = arith.mulf %23, %24 : vector<16x32xf32>
    %26 = vector.broadcast %7 : vector<1x32xf32> to vector<16x32xf32>
    %27 = arith.addf %25, %26 : vector<16x32xf32>
    %c0_14 = arith.constant 0 : index
    %c0_15 = arith.constant 0 : index
    %28 = vector.load %arg8[%c0_14, %c0_15] : memref<16x32xf32, #tpu.memory_space<vmem>>, vector<16x32xf32>
    tpu.vector_store %arg8[%c0_14, %c0_15], %27 {strides = array<i32>} : memref<16x32xf32, #tpu.memory_space<vmem>>, vector<16x32xf32>,
    %c0_16 = arith.constant 0 : index
    %c0_17 = arith.constant 0 : index
    %29 = vector.load %arg6[%c0_16, %c0_17] : memref<32x32xf32, #tpu.memory_space<vmem>>, vector<32x32xf32>
    %cst_18 = arith.constant dense<0.000000e+00> : vector<16x32xf32>
    %30 = tpu.matmul %27, %29, %cst_18 {dimension_numbers = #tpu.dot_dimension_numbers<[1], [0], [0], [1], [0, 0, 1, 1], [], []>} : vector<16x32xf32>, vector<32x32xf32>, vector<16x32xf32> -> vector<16x32xf32>
    %c0_19 = arith.constant 0 : index
    %c0_20 = arith.constant 0 : index
    %31 = vector.load %arg7[%c0_19, %c0_20] : memref<1x32xf32, #tpu.memory_space<vmem>>, vector<1x32xf32>
    %32 = vector.broadcast %31 : vector<1x32xf32> to vector<16x32xf32>
    %33 = arith.addf %30, %32 : vector<16x32xf32>
    %c0_21 = arith.constant 0 : index
    %c0_22 = arith.constant 0 : index
    %34 = vector.load %arg9[%c0_21, %c0_22] : memref<16x32xf32, #tpu.memory_space<vmem>>, vector<16x32xf32>
    tpu.vector_store %arg9[%c0_21, %c0_22], %33 {strides = array<i32>} : memref<16x32xf32, #tpu.memory_space<vmem>>, vector<16x32xf32>,
    return
  }
  func.func @transform_0(%arg0: i32) -> (i32, i32) {
    %c0_i32 = arith.constant 0 : i32
    %c0_i32_0 = arith.constant 0 : i32
    return %arg0, %c0_i32 : i32, i32
  }
  func.func @transform_1(%arg0: i32) -> (i32, i32) {
    %c0_i32 = arith.constant 0 : i32
    %c0_i32_0 = arith.constant 0 : i32
    %c0_i32_1 = arith.constant 0 : i32
    return %c0_i32, %c0_i32_0 : i32, i32
  }
  func.func @transform_2(%arg0: i32) -> (i32, i32) {
    %c0_i32 = arith.constant 0 : i32
    %c0_i32_0 = arith.constant 0 : i32
    %c0_i32_1 = arith.constant 0 : i32
    return %c0_i32, %c0_i32_0 : i32, i32
  }
  func.func @transform_3(%arg0: i32) -> (i32, i32) {
    %c0_i32 = arith.constant 0 : i32
    %c0_i32_0 = arith.constant 0 : i32
    %c0_i32_1 = arith.constant 0 : i32
    return %c0_i32, %c0_i32_0 : i32, i32
  }
  func.func @transform_4(%arg0: i32) -> (i32, i32) {
    %c0_i32 = arith.constant 0 : i32
    %c0_i32_0 = arith.constant 0 : i32
    %c0_i32_1 = arith.constant 0 : i32
    return %c0_i32, %c0_i32_0 : i32, i32
  }
  func.func @transform_5(%arg0: i32) -> (i32, i32) {
    %c0_i32 = arith.constant 0 : i32
    %c0_i32_0 = arith.constant 0 : i32
    %c0_i32_1 = arith.constant 0 : i32
    return %c0_i32, %c0_i32_0 : i32, i32
  }
  func.func @transform_6(%arg0: i32) -> (i32, i32) {
    %c0_i32 = arith.constant 0 : i32
    %c0_i32_0 = arith.constant 0 : i32
    %c0_i32_1 = arith.constant 0 : i32
    return %c0_i32, %c0_i32_0 : i32, i32
  }
  func.func @transform_7(%arg0: i32) -> (i32, i32) {
    %c0_i32 = arith.constant 0 : i32
    %c0_i32_0 = arith.constant 0 : i32
    return %arg0, %c0_i32 : i32, i32
  }
  func.func @transform_8(%arg0: i32) -> (i32, i32) {
    %c0_i32 = arith.constant 0 : i32
    %c0_i32_0 = arith.constant 0 : i32
    return %arg0, %c0_i32 : i32, i32
  }
}

</mosaic_0001>

<llo_original>
// kernel: tpu_custom_call.1
$region0: #{tpu_custom_call.1}
  #allocation0 [shape = 'u32[]', space=smem, size = 0x4, offset = 0x4, fixed_abs, tag = 'smem constant byte address 0x4 - core index']
  #allocation1 [shape = 'u32[144,128]{1,0:T(1,128)}', space=vmem, size = 0x12000, scoped, tag = 'internal scratch']
  %s0 = inlined_call_operand.hbm [shape: f32[16,24], index: 0, kind: input, shape index: {}]
  %s1 = inlined_call_operand.hbm [shape: f32[24,32], index: 1, kind: input, shape index: {}]
  %s2 = inlined_call_operand.vmem [shape: f32[1,32], index: 2, kind: input, shape index: {}]
  %s3 = inlined_call_operand.vmem [shape: f32[1,32], index: 3, kind: input, shape index: {}]
  %s4 = inlined_call_operand.vmem [shape: f32[1,32], index: 4, kind: input, shape index: {}]
  %s5 = inlined_call_operand.hbm [shape: f32[32,32], index: 5, kind: input, shape index: {}]
  %s6 = inlined_call_operand.vmem [shape: f32[1,32], index: 6, kind: input, shape index: {}]
  %s7 = inlined_call_operand.hbm [shape: f32[16,32], index: 7, kind: output, shape index: {0}]
  %s8 = inlined_call_operand.hbm [shape: f32[16,32], index: 8, kind: output, shape index: {1}]
  %9 = xla_tuple %s7, %s8
  %s10 = sld [smem:[#allocation0]]
  $region58: #{tpu_custom_call.1} parent=0
    _
  %s12 = ssub.s32 1, %s10
  %s13 = scalar_select 0, %s12, %s10
  $region1: #{tpu_custom_call.1} parent=0
    #allocation2 [shape = 'u8[8192]{0}', space=vmem, size = 0x2000, scoped, tag = 'input window, operand 0, single buffered']
    #allocation3 [shape = 's32[1]{0}', space=sflag, size = 0x4, scoped, tag = 'scoped memory for tpu_custom_call.1']
    #allocation4 [shape = 's32[1]{0}', space=sflag, size = 0x4, scoped, tag = 'scoped memory for tpu_custom_call.1']
    #allocation5 [shape = 'u8[12288]{0}', space=vmem, size = 0x3000, scoped, tag = 'input window, operand 1, single buffered']
    #allocation6 [shape = 's32[1]{0}', space=sflag, size = 0x4, scoped, tag = 'scoped memory for tpu_custom_call.1']
    #allocation7 [shape = 'u8[16384]{0}', space=vmem, size = 0x4000, scoped, tag = 'input window, operand 5, single buffered']
    #allocation8 [shape = 'u8[8192]{0}', space=vmem, size = 0x2000, scoped, tag = 'output window, operand 0, single buffered']
    #allocation9 [shape = 'u8[8192]{0}', space=vmem, size = 0x2000, scoped, tag = 'output window, operand 1, single buffered']
    #allocation10 [shape = 's32[1]{0}', space=sflag, size = 0x4, scoped, tag = 'scoped memory for tpu_custom_call.1']
    %14 = vsyncpa [#allocation3], 0
    %15 = vsyncpa [#allocation6], 0
    %16 = vsyncpa [#allocation4], 0
    %17 = vsyncpa [#allocation10], 0
    // Predicated region
    $region2: #{tpu_custom_call.1} parent=1 // pred_check
      _
    $region3: #{tpu_custom_call.1} parent=1 // pred_check_branch
      %19 = sbr.rel (0) target = $region5
    $region4: #{tpu_custom_call.1} parent=1 // pred_region
      %s21 = ssub.s32 256, 256
      %22 = vsyncadd [#allocation3], %s21
      %s23 = sshll.u32 [#allocation2], 4
      %s24 = int_to_ptr.vmem [resolvable:$true] %s23
      %29 = dma.hbm_to_vmem [thread:$0]  %s0, 256, %s24, [#allocation3], 128, 128, 8
    $region5: #{tpu_custom_call.1} parent=1 // pred_fallthru
      _
    // Predicated region
    $region6: #{tpu_custom_call.1} parent=1 // pred_check
      _
    $region7: #{tpu_custom_call.1} parent=1 // pred_check_branch
      %31 = sbr.rel (0) target = $region9
    $region8: #{tpu_custom_call.1} parent=1 // pred_region
      %s33 = ssub.s32 384, 384
      %34 = vsyncadd [#allocation6], %s33
      %s35 = sshll.u32 [#allocation5], 4
      %s36 = int_to_ptr.vmem [resolvable:$true] %s35
      %41 = dma.hbm_to_vmem [thread:$0]  %s1, 384, %s36, [#allocation6], 128, 128, 8
    $region9: #{tpu_custom_call.1} parent=1 // pred_fallthru
      _
    // Predicated region
    $region10: #{tpu_custom_call.1} parent=1 // pred_check
      _
    $region11: #{tpu_custom_call.1} parent=1 // pred_check_branch
      %43 = sbr.rel (0) target = $region13
    $region12: #{tpu_custom_call.1} parent=1 // pred_region
      _
    $region13: #{tpu_custom_call.1} parent=1 // pred_fallthru
      _
    // Predicated region
    $region14: #{tpu_custom_call.1} parent=1 // pred_check
      _
    $region15: #{tpu_custom_call.1} parent=1 // pred_check_branch
      %45 = sbr.rel (0) target = $region17
    $region16: #{tpu_custom_call.1} parent=1 // pred_region
      _
    $region17: #{tpu_custom_call.1} parent=1 // pred_fallthru
      _
    // Predicated region
    $region18: #{tpu_custom_call.1} parent=1 // pred_check
      _
    $region19: #{tpu_custom_call.1} parent=1 // pred_check_branch
      %47 = sbr.rel (0) target = $region21
    $region20: #{tpu_custom_call.1} parent=1 // pred_region
      _
    $region21: #{tpu_custom_call.1} parent=1 // pred_fallthru
      _
    // Predicated region
    $region22: #{tpu_custom_call.1} parent=1 // pred_check
      _
    $region23: #{tpu_custom_call.1} parent=1 // pred_check_branch
      %49 = sbr.rel (0) target = $region25
    $region24: #{tpu_custom_call.1} parent=1 // pred_region
      %s51 = ssub.s32 512, 512
      %52 = vsyncadd [#allocation6], %s51
      %s53 = sshll.u32 [#allocation7], 4
      %s54 = int_to_ptr.vmem [resolvable:$true] %s53
      %59 = dma.hbm_to_vmem [thread:$0]  %s5, 512, %s54, [#allocation6], 128, 128, 8
    $region25: #{tpu_custom_call.1} parent=1 // pred_fallthru
      _
    // Predicated region
    $region26: #{tpu_custom_call.1} parent=1 // pred_check
      _
    $region27: #{tpu_custom_call.1} parent=1 // pred_check_branch
      %61 = sbr.rel (0) target = $region29
    $region28: #{tpu_custom_call.1} parent=1 // pred_region
      _
    $region29: #{tpu_custom_call.1} parent=1 // pred_fallthru
      _
    // Predicated region
    $region30: #{tpu_custom_call.1} parent=1 // pred_check
      _
    $region31: #{tpu_custom_call.1} parent=1 // pred_check_branch
      %63 = sbr.rel (0) target = $region33
    $region32: #{tpu_custom_call.1} parent=1 // pred_region
      %64 = dma.done [#allocation3], 256
    $region33: #{tpu_custom_call.1} parent=1 // pred_fallthru
      _
    // Predicated region
    $region34: #{tpu_custom_call.1} parent=1 // pred_check
      _
    $region35: #{tpu_custom_call.1} parent=1 // pred_check_branch
      %66 = sbr.rel (0) target = $region37
    $region36: #{tpu_custom_call.1} parent=1 // pred_region
      %67 = dma.done [#allocation6], 384
    $region37: #{tpu_custom_call.1} parent=1 // pred_fallthru
      _
    // Predicated region
    $region38: #{tpu_custom_call.1} parent=1 // pred_check
      _
    $region39: #{tpu_custom_call.1} parent=1 // pred_check_branch
      %69 = sbr.rel (0) target = $region41
    $region40: #{tpu_custom_call.1} parent=1 // pred_region
      %70 = dma.done [#allocation6], 512
    $region41: #{tpu_custom_call.1} parent=1 // pred_fallthru
      _
    %v71 = vld [vmem:[#allocation2] sm:$0xff]
    %v72 = vld [vmem:[#allocation2 + $0x8] sm:$0xff]
    %v73 = vld [vmem:[#allocation5] sm:$0xff]
    %v74 = vld [vmem:[#allocation5 + $0x8] sm:$0xff]
    %v75 = vld [vmem:[#allocation5 + $0x10] sm:$0xff]
    %v76 = vld [vmem:[%s2] sm:$0x1]
    %v78 = vlaneseq
    %v79 = vshrl.u32 %v78, 7
    %v80 = vsub.s32 0, %v79
    %v81 = vrot.slane %v76, %v80
    %vm83 = vcmask 195584
    %v85 = vsel %vm83, %v71, 0
    %v88 = vsel %vm83, %v72, 0
    %90 = vmatprep.subr.mxu0 0.0
    %91 = vmatpush1.msra.mxu0 %v73
    %92 = vmatprep.subr.mxu0 0.0
    %93 = vmatpush1.msra.mxu0 %v74
    %94 = vmatprep.subr.mxu0 0.0
    %95 = vmatpush1.msra.mxu0 %v75
    %96 = vmatprep.subr.mxu0 0.0
    %97 = vmatpush1.msra.mxu0 0.0
    %98 = vmatprep.subr.mxu0 0.0
    %99 = vmatpush1.msra.mxu0 0.0
    %100 = vmatprep.subr.mxu0 0.0
    %101 = vmatpush1.msra.mxu0 0.0
    %102 = vmatprep.subr.mxu0 0.0
    %103 = vmatpush1.msra.mxu0 0.0
    %104 = vmatprep.subr.mxu0 0.0
    %105 = vmatpush1.msra.mxu0 0.0
    %106 = vmatprep.subr.mxu0 0.0
    %107 = vmatpush1.msra.mxu0 0.0
    %108 = vmatprep.subr.mxu0 0.0
    %109 = vmatpush1.msra.mxu0 0.0
    %110 = vmatprep.subr.mxu0 0.0
    %111 = vmatpush1.msra.mxu0 0.0
    %112 = vmatprep.subr.mxu0 0.0
    %113 = vmatpush1.msra.mxu0 0.0
    %114 = vmatprep.subr.mxu0 0.0
    %115 = vmatpush1.msra.mxu0 0.0
    %116 = vmatprep.subr.mxu0 0.0
    %117 = vmatpush1.msra.mxu0 0.0
    %118 = vmatprep.subr.mxu0 0.0
    %119 = vmatpush1.msra.mxu0 0.0
    %120 = vmatprep.subr.mxu0 0.0
    %121 = vmatpush1.msra.mxu0 0.0
    %122 = vmatprep.subr.mxu0 0.0
    %123 = vmatpush1.msra.mxu0 0.0
    %124 = vmatprep.subr.mxu0 0.0
    %125 = vmatpush1.msra.mxu0 0.0
    %126 = vmatprep.subr.mxu0 0.0
    %127 = vmatpush1.msra.mxu0 0.0
    %128 = vmatprep.subr.mxu0 0.0
    %129 = vmatpush1.msra.mxu0 0.0
    %130 = vmatprep.subr.mxu0 0.0
    %131 = vmatpush1.msra.mxu0 0.0
    %132 = vmatprep.subr.mxu0 0.0
    %133 = vmatpush1.msra.mxu0 0.0
    %134 = vmatprep.subr.mxu0 0.0
    %135 = vmatpush1.msra.mxu0 0.0
    %136 = vmatprep.subr.mxu0 0.0
    %137 = vmatpush1.msra.mxu0 0.0
    %138 = vmatprep.subr.mxu0 0.0
    %139 = vmatpush1.msra.mxu0 0.0
    %140 = vmatprep.subr.mxu0 0.0
    %141 = vmatpush1.msra.mxu0 0.0
    %142 = vmatprep.subr.mxu0 0.0
    %143 = vmatpush1.msra.mxu0 0.0
    %144 = vmatprep.subr.mxu0 0.0
    %145 = vmatpush1.msra.mxu0 0.0
    %146 = vmatprep.subr.mxu0 0.0
    %147 = vmatpush1.msra.mxu0 0.0
    %148 = vmatprep.subr.mxu0 0.0
    %149 = vmatpush1.msra.mxu0 0.0
    %150 = vmatprep.subr.mxu0 0.0
    %151 = vmatpush1.msra.mxu0 0.0
    %152 = vmatprep.subr.mxu0 0.0
    %153 = vmatpush1.msra.mxu0 0.0
    %154 = vmatprep.mubr.f32.mxu0 0.0
    %155 = vmatmul.mubr.f32.gmra.mrb[0].mxu0 %v85
    %v156 = vpop.f32.mrb[0].mxu0
    %v157 = vadd.f32 %v81, %v156
    %v158 = vpop.f32.mrb[0].mxu0
    %159 = vmatprep.mubr.f32.mxu0 0.0
    %160 = vmatmul.mubr.f32.gmra.mrb[0].mxu0 %v88
    %v161 = vpop.f32.mrb[0].mxu0
    %v162 = vadd.f32 %v81, %v161
    %v163 = vpop.f32.mrb[0].mxu0
    %164 = vdwg.mxu0
    %v165 = vld [vmem:[%s3] sm:$0x1]
    %v166 = vld [vmem:[%s4] sm:$0x1]
    %vm167 = vcmask 261120
    %v168 = vsel %vm167, %v157, 0.0
    %169 = vadd.xlane.f32.xlu0 %v168
    %v170 = vpop.xlane.xlu0 %169
    %v171 = vsel %vm167, %v162, 0.0
    %172 = vadd.xlane.f32.xlu0 %v171
    %v173 = vpop.xlane.xlu0 %172
    %v174 = vrcp.pop 32.0
    %v175 = vmul.f32 %v170, %v174
    %v176 = vmul.f32 %v173, %v174
    %v177 = vsub.f32 %v157, %v175
    %v178 = vsub.f32 %v162, %v176
    %v179 = vmul.f32 %v177, %v177
    %v180 = vmul.f32 %v178, %v178
    %v181 = vsel %vm167, %v179, 0.0
    %182 = vadd.xlane.f32.xlu0 %v181
    %v183 = vpop.xlane.xlu0 %182
    %v184 = vsel %vm167, %v180, 0.0
    %185 = vadd.xlane.f32.xlu0 %v184
    %v186 = vpop.xlane.xlu0 %185
    %v187 = vmul.f32 %v183, %v174
    %v188 = vmul.f32 %v186, %v174
    %v189 = vadd.f32 %v187, 1e-05
    %v190 = vadd.f32 %v188, 1e-05
    %v191 = vrsqrt.pop %v189
    %v192 = vrsqrt.pop %v190
    %v193 = vmul.f32 %v177, %v191
    %v194 = vmul.f32 %v178, %v192
    %v196 = vlaneseq
    %v197 = vshrl.u32 %v196, 7
    %v198 = vsub.s32 0, %v197
    %v199 = vrot.slane %v165, %v198
    %v201 = vmul.f32 %v193, %v199
    %v202 = vmul.f32 %v194, %v199
    %v204 = vlaneseq
    %v205 = vshrl.u32 %v204, 7
    %v206 = vsub.s32 0, %v205
    %v207 = vrot.slane %v166, %v206
    %v209 = vadd.f32 %v201, %v207
    %v210 = vadd.f32 %v202, %v207
    %211 = vst.msk [vmem:[#allocation8] sm:$0xff] %vm167, %v209
    %212 = vst.msk [vmem:[#allocation8 + $0x8] sm:$0xff] %vm167, %v210
    %v213 = vld [vmem:[#allocation7] sm:$0xff]
    %v214 = vld [vmem:[#allocation7 + $0x8] sm:$0xff]
    %v215 = vld [vmem:[#allocation7 + $0x10] sm:$0xff]
    %v216 = vld [vmem:[#allocation7 + $0x18] sm:$0xff]
    %v217 = vld [vmem:[%s6] sm:$0x1]
    %v219 = vlaneseq
    %v220 = vshrl.u32 %v219, 7
    %v221 = vsub.s32 0, %v220
    %v222 = vrot.slane %v217, %v221
    %v225 = vsel %vm167, %v209, 0
    %v228 = vsel %vm167, %v210, 0
    %230 = vmatprep.subr.mxu0 0.0
    %231 = vmatpush1.msra.mxu0 %v213
    %232 = vmatprep.subr.mxu0 0.0
    %233 = vmatpush1.msra.mxu0 %v214
    %234 = vmatprep.subr.mxu0 0.0
    %235 = vmatpush1.msra.mxu0 %v215
    %236 = vmatprep.subr.mxu0 0.0
    %237 = vmatpush1.msra.mxu0 %v216
    %238 = vmatprep.subr.mxu0 0.0
    %239 = vmatpush1.msra.mxu0 0.0
    %240 = vmatprep.subr.mxu0 0.0
    %241 = vmatpush1.msra.mxu0 0.0
    %242 = vmatprep.subr.mxu0 0.0
    %243 = vmatpush1.msra.mxu0 0.0
    %244 = vmatprep.subr.mxu0 0.0
    %245 = vmatpush1.msra.mxu0 0.0
    %246 = vmatprep.subr.mxu0 0.0
    %247 = vmatpush1.msra.mxu0 0.0
    %248 = vmatprep.subr.mxu0 0.0
    %249 = vmatpush1.msra.mxu0 0.0
    %250 = vmatprep.subr.mxu0 0.0
    %251 = vmatpush1.msra.mxu0 0.0
    %252 = vmatprep.subr.mxu0 0.0
    %253 = vmatpush1.msra.mxu0 0.0
    %254 = vmatprep.subr.mxu0 0.0
    %255 = vmatpush1.msra.mxu0 0.0
    %256 = vmatprep.subr.mxu0 0.0
    %257 = vmatpush1.msra.mxu0 0.0
    %258 = vmatprep.subr.mxu0 0.0
    %259 = vmatpush1.msra.mxu0 0.0
    %260 = vmatprep.subr.mxu0 0.0
    %261 = vmatpush1.msra.mxu0 0.0
    %262 = vmatprep.subr.mxu0 0.0
    %263 = vmatpush1.msra.mxu0 0.0
    %264 = vmatprep.subr.mxu0 0.0
    %265 = vmatpush1.msra.mxu0 0.0
    %266 = vmatprep.subr.mxu0 0.0
    %267 = vmatpush1.msra.mxu0 0.0
    %268 = vmatprep.subr.mxu0 0.0
    %269 = vmatpush1.msra.mxu0 0.0
    %270 = vmatprep.subr.mxu0 0.0
    %271 = vmatpush1.msra.mxu0 0.0
    %272 = vmatprep.subr.mxu0 0.0
    %273 = vmatpush1.msra.mxu0 0.0
    %274 = vmatprep.subr.mxu0 0.0
    %275 = vmatpush1.msra.mxu0 0.0
    %276 = vmatprep.subr.mxu0 0.0
    %277 = vmatpush1.msra.mxu0 0.0
    %278 = vmatprep.subr.mxu0 0.0
    %279 = vmatpush1.msra.mxu0 0.0
    %280 = vmatprep.subr.mxu0 0.0
    %281 = vmatpush1.msra.mxu0 0.0
    %282 = vmatprep.subr.mxu0 0.0
    %283 = vmatpush1.msra.mxu0 0.0
    %284 = vmatprep.subr.mxu0 0.0
    %285 = vmatpush1.msra.mxu0 0.0
    %286 = vmatprep.subr.mxu0 0.0
    %287 = vmatpush1.msra.mxu0 0.0
    %288 = vmatprep.subr.mxu0 0.0
    %289 = vmatpush1.msra.mxu0 0.0
    %290 = vmatprep.subr.mxu0 0.0
    %291 = vmatpush1.msra.mxu0 0.0
    %292 = vmatprep.subr.mxu0 0.0
    %293 = vmatpush1.msra.mxu0 0.0
    %294 = vmatprep.mubr.f32.mxu0 0.0
    %295 = vmatmul.mubr.f32.gmra.mrb[0].mxu0 %v225
    %v296 = vpop.f32.mrb[0].mxu0
    %v297 = vadd.f32 %v222, %v296
    %v298 = vpop.f32.mrb[0].mxu0
    %299 = vmatprep.mubr.f32.mxu0 0.0
    %300 = vmatmul.mubr.f32.gmra.mrb[0].mxu0 %v228
    %v301 = vpop.f32.mrb[0].mxu0
    %v302 = vadd.f32 %v222, %v301
    %v303 = vpop.f32.mrb[0].mxu0
    %304 = vdwg.mxu0
    %305 = vst.msk [vmem:[#allocation9] sm:$0xff] %vm167, %v297
    %306 = vst.msk [vmem:[#allocation9 + $0x8] sm:$0xff] %vm167, %v302
    // Predicated region
    $region42: #{tpu_custom_call.1} parent=1 // pred_check
      _
    $region43: #{tpu_custom_call.1} parent=1 // pred_check_branch
      %308 = sbr.rel (0) target = $region45
    $region44: #{tpu_custom_call.1} parent=1 // pred_region
      %s310 = ssub.s32 256, 256
      %311 = vsyncadd [#allocation4], %s310
      %s312 = sshll.u32 [#allocation8], 4
      %s313 = int_to_ptr.vmem [resolvable:$true] %s312
      %318 = dma.vmem_to_hbm [thread:$0]  %s313, 256, %s7, [#allocation4], 128, 128, 8
    $region45: #{tpu_custom_call.1} parent=1 // pred_fallthru
      _
    // Predicated region
    $region46: #{tpu_custom_call.1} parent=1 // pred_check
      _
    $region47: #{tpu_custom_call.1} parent=1 // pred_check_branch
      %320 = sbr.rel (0) target = $region49
    $region48: #{tpu_custom_call.1} parent=1 // pred_region
      %s322 = ssub.s32 256, 256
      %323 = vsyncadd [#allocation10], %s322
      %s324 = sshll.u32 [#allocation9], 4
      %s325 = int_to_ptr.vmem [resolvable:$true] %s324
      %330 = dma.vmem_to_hbm [thread:$0]  %s325, 256, %s8, [#allocation10], 128, 128, 8
    $region49: #{tpu_custom_call.1} parent=1 // pred_fallthru
      _
    // Predicated region
    $region50: #{tpu_custom_call.1} parent=1 // pred_check
      _
    $region51: #{tpu_custom_call.1} parent=1 // pred_check_branch
      %332 = sbr.rel (0) target = $region53
    $region52: #{tpu_custom_call.1} parent=1 // pred_region
      %333 = dma.done [#allocation4], 256
    $region53: #{tpu_custom_call.1} parent=1 // pred_fallthru
      _
    // Predicated region
    $region54: #{tpu_custom_call.1} parent=1 // pred_check
      _
    $region55: #{tpu_custom_call.1} parent=1 // pred_check_branch
      %335 = sbr.rel (0) target = $region57
    $region56: #{tpu_custom_call.1} parent=1 // pred_region
      %336 = dma.done [#allocation10], 256
    $region57: #{tpu_custom_call.1} parent=1 // pred_fallthru
      _
    %337 = vsyncpa [#allocation3], 1
    %338 = vsyncpa [#allocation6], 1
    %339 = vsyncpa [#allocation4], 1
    %340 = vsyncpa [#allocation10], 1

</llo_original>
